<compile_context>
chip_gen: v7x
topology: tpu7x:2x2x1
jax: 0.10.0
libtpu: 0.0.40
codegen_flags: <defaults>
</compile_context>

<pallas_src>
import jax
import jax.numpy as jnp
from jax import lax
from jax.experimental import pallas as pl
from jax.experimental.pallas import tpu as pltpu


_CONTRACT_DIM1 = (((1,), (1,)), ((), ()))  # x[..., K] . W[N, K] -> [..., N]


def _gated_fusion_kernel_resident(x1_ref, x2_ref, w1_ref, w2_ref, b_ref, o_ref):
    """Single column block: both (Hp, Hp) weights resident; blend uses the full x tiles."""
    x1 = x1_ref[...]                       # (tm, Hp), input dtype feeds the MXU directly
    x2 = x2_ref[...]
    logits = (
        lax.dot_general(x1, w1_ref[...], _CONTRACT_DIM1,
                        preferred_element_type=jnp.float32)
        + lax.dot_general(x2, w2_ref[...], _CONTRACT_DIM1,
                          preferred_element_type=jnp.float32)
        + b_ref[...]                       # (1, Hp) f32, broadcasts over the row tile
    )
    gate = jax.nn.sigmoid(logits)          # f32 (EUP)
    x1f = x1.astype(jnp.float32)
    x2f = x2.astype(jnp.float32)
    o_ref[...] = (x2f + gate * (x1f - x2f)).astype(o_ref.dtype)


def _gated_fusion_kernel_streamed(x1_ref, x2_ref, x1c_ref, x2c_ref,
                                  w1_ref, w2_ref, b_ref, o_ref):
    """Column-streamed: weights arrive as (tn, Hp) blocks; x1c/x2c are the matching
    (tm, tn) column blocks of the inputs used for the blend."""
    logits = (
        lax.dot_general(x1_ref[...], w1_ref[...], _CONTRACT_DIM1,
                        preferred_element_type=jnp.float32)
        + lax.dot_general(x2_ref[...], w2_ref[...], _CONTRACT_DIM1,
                          preferred_element_type=jnp.float32)
        + b_ref[...]
    )
    gate = jax.nn.sigmoid(logits)
    x1c = x1c_ref[...].astype(jnp.float32)
    x2c = x2c_ref[...].astype(jnp.float32)
    o_ref[...] = (x2c + gate * (x1c - x2c)).astype(o_ref.dtype)


def _round_up(a, m):
    return (a + m - 1) // m * m


def gated_fusion(x1, x2, weight, bias, *, row_tile=256, col_tile=None,
                 vmem_limit_bytes=None):
    """x1, x2: [..., H]; weight: (H, 2H) (PyTorch nn.Linear layout); bias: (H,)."""
    assert x1.shape == x2.shape and x1.dtype == x2.dtype
    H = x1.shape[-1]
    assert weight.shape == (H, 2 * H) and bias.shape == (H,)

    orig_shape = x1.shape
    out_dtype = x1.dtype
    x1f = x1.reshape(-1, H)
    x2f = x2.reshape(-1, H)
    M = x1f.shape[0]

    # Split the Linear weight WITHOUT transposing (y = x @ W^T + b): the kernel contracts
    # against dim 1 of these (out_features, in_features) slices. Weights are fed to the
    # MXU in the input dtype (bf16 in -> bf16 matmul, f32 accumulation).
    w_dtype = x1.dtype
    w1 = weight[:, :H].astype(w_dtype)
    w2 = weight[:, H:].astype(w_dtype)
    b2d = bias.reshape(1, H).astype(jnp.float32)

    # Lane-dense feature padding: pad H to a multiple of 128 (zero columns are inert in the
    # matmul; padded output columns are sliced away).
    Hp = _round_up(H, 128)
    if Hp != H:
        ph = Hp - H
        x1f = jnp.pad(x1f, ((0, 0), (0, ph)))
        x2f = jnp.pad(x2f, ((0, 0), (0, ph)))
        w1 = jnp.pad(w1, ((0, ph), (0, ph)))
        w2 = jnp.pad(w2, ((0, ph), (0, ph)))
        b2d = jnp.pad(b2d, ((0, 0), (0, ph)))

    # Large, sublane-aligned row tile; pad M up to a tile multiple so the grid stays
    # tiled + software-pipelined instead of collapsing to a single step.
    itemsize = jnp.dtype(x1.dtype).itemsize
    sub = 8 if itemsize >= 4 else 16
    tm = max(sub, min(_round_up(row_tile, sub), _round_up(M, sub)))
    Mp = _round_up(M, tm)
    if Mp != M:
        pm = Mp - M
        x1f = jnp.pad(x1f, ((0, pm), (0, 0)))
        x2f = jnp.pad(x2f, ((0, pm), (0, 0)))

    # Column tile: keep both (Hp, Hp) weights resident when they fit comfortably (the
    # pipeline still allocates 2 buffers per operand, hence the 4x factor); otherwise
    # stream (tn, Hp) weight blocks so the working set stays bounded (v7x 64 MiB VMEM).
    if col_tile is None:
        if 4 * Hp * Hp * itemsize <= 16 * 1024 * 1024:
            tn = Hp
        elif Hp % 512 == 0:
            tn = 512
        elif Hp % 256 == 0:
            tn = 256
        else:
            tn = 128
    else:
        tn = col_tile
    assert tn % 128 == 0 and Hp % tn == 0

    cp_kwargs = {}
    if vmem_limit_bytes is not None:
        cp_kwargs["vmem_limit_bytes"] = vmem_limit_bytes

    if tn == Hp:
        # Resident-weight path: 1-D grid over row stripes; weight/bias block index is
        # constant, so they are DMA'd into VMEM only once.
        grid = (Mp // tm,)
        out = pl.pallas_call(
            _gated_fusion_kernel_resident,
            out_shape=jax.ShapeDtypeStruct((Mp, Hp), out_dtype),
            grid=grid,
            in_specs=[
                pl.BlockSpec((tm, Hp), lambda i: (i, 0)),   # x1 row stripe
                pl.BlockSpec((tm, Hp), lambda i: (i, 0)),   # x2 row stripe
                pl.BlockSpec((Hp, Hp), lambda i: (0, 0)),   # W1 (resident)
                pl.BlockSpec((Hp, Hp), lambda i: (0, 0)),   # W2 (resident)
                pl.BlockSpec((1, Hp), lambda i: (0, 0)),    # bias (f32)
            ],
            out_specs=pl.BlockSpec((tm, Hp), lambda i: (i, 0)),
            compiler_params=pltpu.CompilerParams(
                dimension_semantics=("parallel",), **cp_kwargs),
        )(x1f, x2f, w1, w2, b2d)
    else:
        # Column-streamed path: 2-D grid (row stripes x output-column blocks). The x row
        # stripes have a j-independent block index so they are not re-fetched across the
        # column sweep; weights stream as (tn, Hp) blocks; x1c/x2c are the (tm, tn)
        # column blocks needed for the blend.
        grid = (Mp // tm, Hp // tn)
        out = pl.pallas_call(
            _gated_fusion_kernel_streamed,
            out_shape=jax.ShapeDtypeStruct((Mp, Hp), out_dtype),
            grid=grid,
            in_specs=[
                pl.BlockSpec((tm, Hp), lambda i, j: (i, 0)),   # x1 row stripe (matmul)
                pl.BlockSpec((tm, Hp), lambda i, j: (i, 0)),   # x2 row stripe (matmul)
                pl.BlockSpec((tm, tn), lambda i, j: (i, j)),   # x1 column block (blend)
                pl.BlockSpec((tm, tn), lambda i, j: (i, j)),   # x2 column block (blend)
                pl.BlockSpec((tn, Hp), lambda i, j: (j, 0)),   # W1 column block
                pl.BlockSpec((tn, Hp), lambda i, j: (j, 0)),   # W2 column block
                pl.BlockSpec((1, tn), lambda i, j: (0, j)),    # bias column block (f32)
            ],
            out_specs=pl.BlockSpec((tm, tn), lambda i, j: (i, j)),
            compiler_params=pltpu.CompilerParams(
                dimension_semantics=("parallel", "parallel"), **cp_kwargs),
        )(x1f, x2f, x1f, x2f, w1, w2, b2d)

    return out[:M, :H].reshape(orig_shape)


def gated_fusion_ref(x1, x2, weight, bias):
    concat = jnp.concatenate([x1, x2], axis=-1)
    gate = jax.nn.sigmoid(concat @ weight.T + bias)
    return gate * x1 + (1.0 - gate) * x2


if __name__ == "__main__":
    key = jax.random.PRNGKey(0)
    batch, seq, hidden = 2, 8, 32

    k1, k2, kw, kb = jax.random.split(key, 4)
    x1 = jax.random.normal(k1, (batch, seq, hidden), dtype=jnp.float32)
    x2 = jax.random.normal(k2, (batch, seq, hidden), dtype=jnp.float32)

    # Deterministic nn.Linear(hidden*2, hidden) params (Kaiming-uniform-ish bounds).
    bound = 1.0 / (2.0 * hidden) ** 0.5
    weight = jax.random.uniform(kw, (hidden, 2 * hidden), jnp.float32, -bound, bound)
    bias = jax.random.uniform(kb, (hidden,), jnp.float32, -bound, bound)

    # 1) f32 path (H padded to 128; weights resident).
    out = jax.block_until_ready(gated_fusion(x1, x2, weight, bias))
    ref = gated_fusion_ref(x1, x2, weight, bias)
    assert out.shape == x1.shape
    assert jnp.allclose(out, ref, atol=1e-5, rtol=1e-5), "f32 mismatch vs reference"

    # 2) bf16 path: inputs + weights feed the MXU in bf16, f32 accumulation.
    out_bf16 = jax.block_until_ready(
        gated_fusion(x1.astype(jnp.bfloat16), x2.astype(jnp.bfloat16), weight, bias))
    assert out_bf16.dtype == jnp.bfloat16
    assert jnp.allclose(out_bf16.astype(jnp.float32), ref, atol=5e-2, rtol=5e-2), \
        "bf16 mismatch vs reference"

    # 3) Column-streamed path (2-D grid over output columns), slightly larger H.
    hidden2 = 256
    k1, k2, kw, kb = jax.random.split(jax.random.PRNGKey(1), 4)
    y1 = jax.random.normal(k1, (batch, seq, hidden2), dtype=jnp.float32)
    y2 = jax.random.normal(k2, (batch, seq, hidden2), dtype=jnp.float32)
    bound2 = 1.0 / (2.0 * hidden2) ** 0.5
    weight2 = jax.random.uniform(kw, (hidden2, 2 * hidden2), jnp.float32, -bound2, bound2)
    bias2 = jax.random.uniform(kb, (hidden2,), jnp.float32, -bound2, bound2)
    out2 = jax.block_until_ready(gated_fusion(y1, y2, weight2, bias2, col_tile=128))
    ref2 = gated_fusion_ref(y1, y2, weight2, bias2)
    assert jnp.allclose(out2, ref2, atol=1e-4, rtol=1e-4), "streamed path mismatch"

    print("KERNEL_OK")
</pallas_src>

<mosaic_0001>
module attributes {stable_mosaic.version = 11 : i64} {
  func.func @_gated_fusion_kernel_resident(%arg0: i32, %arg1: memref<16x128xf32, #tpu.memory_space<vmem>>, %arg2: memref<16x128xf32, #tpu.memory_space<vmem>>, %arg3: memref<128x128xf32, #tpu.memory_space<vmem>>, %arg4: memref<128x128xf32, #tpu.memory_space<vmem>>, %arg5: memref<1x128xf32, #tpu.memory_space<vmem>>, %arg6: memref<16x128xf32, #tpu.memory_space<vmem>>) attributes {dimension_semantics = [#tpu.dimension_semantics<parallel>], iteration_bounds = array<i64: 1>, scalar_prefetch = 0 : i64, scratch_operands = 0 : i64, tpu.core_type = #tpu.core_type<tc>, window_params = [{transform_indices = @transform_0, window_bounds = array<i64: 16, 128>}, {transform_indices = @transform_1, window_bounds = array<i64: 16, 128>}, {pipeline_mode = #tpu.pipeline_mode<synchronous>, transform_indices = @transform_2, window_bounds = array<i64: 128, 128>}, {pipeline_mode = #tpu.pipeline_mode<synchronous>, transform_indices = @transform_3, window_bounds = array<i64: 128, 128>}, {pipeline_mode = #tpu.pipeline_mode<synchronous>, transform_indices = @transform_4, window_bounds = array<i64: 1, 128>}, {transform_indices = @transform_5, window_bounds = array<i64: 16, 128>}]} {
    %c0 = arith.constant 0 : index
    %c0_0 = arith.constant 0 : index
    %0 = vector.load %arg1[%c0, %c0_0] : memref<16x128xf32, #tpu.memory_space<vmem>>, vector<16x128xf32>
    %c0_1 = arith.constant 0 : index
    %c0_2 = arith.constant 0 : index
    %1 = vector.load %arg2[%c0_1, %c0_2] : memref<16x128xf32, #tpu.memory_space<vmem>>, vector<16x128xf32>
    %c0_3 = arith.constant 0 : index
    %c0_4 = arith.constant 0 : index
    %2 = vector.load %arg3[%c0_3, %c0_4] : memref<128x128xf32, #tpu.memory_space<vmem>>, vector<128x128xf32>
    %cst = arith.constant dense<0.000000e+00> : vector<16x128xf32>
    %3 = tpu.matmul %0, %2, %cst {dimension_numbers = #tpu.dot_dimension_numbers<[1], [1], [0], [0], [0, 0, 1, 0], [], []>} : vector<16x128xf32>, vector<128x128xf32>, vector<16x128xf32> -> vector<16x128xf32>
    %c0_5 = arith.constant 0 : index
    %c0_6 = arith.constant 0 : index
    %4 = vector.load %arg4[%c0_5, %c0_6] : memref<128x128xf32, #tpu.memory_space<vmem>>, vector<128x128xf32>
    %cst_7 = arith.constant dense<0.000000e+00> : vector<16x128xf32>
    %5 = tpu.matmul %1, %4, %cst_7 {dimension_numbers = #tpu.dot_dimension_numbers<[1], [1], [0], [0], [0, 0, 1, 0], [], []>} : vector<16x128xf32>, vector<128x128xf32>, vector<16x128xf32> -> vector<16x128xf32>
    %6 = arith.addf %3, %5 : vector<16x128xf32>
    %c0_8 = arith.constant 0 : index
    %c0_9 = arith.constant 0 : index
    %7 = vector.load %arg5[%c0_8, %c0_9] : memref<1x128xf32, #tpu.memory_space<vmem>>, vector<1x128xf32>
    %8 = vector.broadcast %7 : vector<1x128xf32> to vector<16x128xf32>
    %9 = arith.addf %6, %8 : vector<16x128xf32>
    %10 = arith.negf %9 : vector<16x128xf32>
    %11 = math.exp %10 : vector<16x128xf32>
    %cst_10 = arith.constant 1.000000e+00 : f32
    %12 = vector.broadcast %cst_10 : f32 to vector<16x128xf32>
    %13 = arith.addf %12, %11 : vector<16x128xf32>
    %14 = arith.divf %12, %13 : vector<16x128xf32>
    %15 = arith.subf %0, %1 : vector<16x128xf32>
    %16 = arith.mulf %14, %15 : vector<16x128xf32>
    %17 = arith.addf %1, %16 : vector<16x128xf32>
    %c0_11 = arith.constant 0 : index
    %c0_12 = arith.constant 0 : index
    %18 = vector.load %arg6[%c0_11, %c0_12] : memref<16x128xf32, #tpu.memory_space<vmem>>, vector<16x128xf32>
    tpu.vector_store %arg6[%c0_11, %c0_12], %17 {strides = array<i32>} : memref<16x128xf32, #tpu.memory_space<vmem>>, vector<16x128xf32>,
    return
  }
  func.func @transform_0(%arg0: i32) -> (i32, i32) {
    %c0_i32 = arith.constant 0 : i32
    %c0_i32_0 = arith.constant 0 : i32
    return %arg0, %c0_i32 : i32, i32
  }
  func.func @transform_1(%arg0: i32) -> (i32, i32) {
    %c0_i32 = arith.constant 0 : i32
    %c0_i32_0 = arith.constant 0 : i32
    return %arg0, %c0_i32 : i32, i32
  }
  func.func @transform_2(%arg0: i32) -> (i32, i32) {
    %c0_i32 = arith.constant 0 : i32
    %c0_i32_0 = arith.constant 0 : i32
    %c0_i32_1 = arith.constant 0 : i32
    return %c0_i32, %c0_i32_0 : i32, i32
  }
  func.func @transform_3(%arg0: i32) -> (i32, i32) {
    %c0_i32 = arith.constant 0 : i32
    %c0_i32_0 = arith.constant 0 : i32
    %c0_i32_1 = arith.constant 0 : i32
    return %c0_i32, %c0_i32_0 : i32, i32
  }
  func.func @transform_4(%arg0: i32) -> (i32, i32) {
    %c0_i32 = arith.constant 0 : i32
    %c0_i32_0 = arith.constant 0 : i32
    %c0_i32_1 = arith.constant 0 : i32
    return %c0_i32, %c0_i32_0 : i32, i32
  }
  func.func @transform_5(%arg0: i32) -> (i32, i32) {
    %c0_i32 = arith.constant 0 : i32
    %c0_i32_0 = arith.constant 0 : i32
    return %arg0, %c0_i32 : i32, i32
  }
}

</mosaic_0001>

<llo_original>
// kernel: tpu_custom_call.1
$region0: #{tpu_custom_call.1}
  #allocation0 [shape = 'u32[]', space=smem, size = 0x4, offset = 0x4, fixed_abs, tag = 'smem constant byte address 0x4 - core index']
  #allocation1 [shape = 'u32[144,128]{1,0:T(1,128)}', space=vmem, size = 0x12000, scoped, tag = 'internal scratch']
  %s0 = inlined_call_operand.hbm [shape: f32[16,128], index: 0, kind: input, shape index: {}]
  %s1 = inlined_call_operand.hbm [shape: f32[16,128], index: 1, kind: input, shape index: {}]
  %s2 = inlined_call_operand.hbm [shape: f32[128,128], index: 2, kind: input, shape index: {}]
  %s3 = inlined_call_operand.hbm [shape: f32[128,128], index: 3, kind: input, shape index: {}]
  %s4 = inlined_call_operand.vmem [shape: f32[1,128], index: 4, kind: input, shape index: {}]
  %s5 = inlined_call_operand.hbm [shape: f32[16,128], index: 5, kind: output, shape index: {}]
  %s6 = sld [smem:[#allocation0]]
  $region46: #{tpu_custom_call.1} parent=0
    _
  %s8 = ssub.s32 1, %s6
  %s9 = scalar_select 0, %s8, %s6
  $region1: #{tpu_custom_call.1} parent=0
    #allocation2 [shape = 'u8[8192]{0}', space=vmem, size = 0x2000, scoped, tag = 'input window, operand 0, single buffered']
    #allocation3 [shape = 's32[1]{0}', space=sflag, size = 0x4, scoped, tag = 'scoped memory for tpu_custom_call.1']
    #allocation4 [shape = 's32[1]{0}', space=sflag, size = 0x4, scoped, tag = 'scoped memory for tpu_custom_call.1']
    #allocation5 [shape = 'u8[8192]{0}', space=vmem, size = 0x2000, scoped, tag = 'input window, operand 1, single buffered']
    #allocation6 [shape = 's32[1]{0}', space=sflag, size = 0x4, scoped, tag = 'scoped memory for tpu_custom_call.1']
    #allocation7 [shape = 'u8[65536]{0}', space=vmem, size = 0x10000, scoped, tag = 'input window, operand 2, single buffered']
    #allocation8 [shape = 'u8[65536]{0}', space=vmem, size = 0x10000, scoped, tag = 'input window, operand 3, single buffered']
    #allocation9 [shape = 's32[1]{0}', space=sflag, size = 0x4, scoped, tag = 'scoped memory for tpu_custom_call.1']
    #allocation10 [shape = 'u8[8192]{0}', space=vmem, size = 0x2000, scoped, tag = 'output window, operand 0, single buffered']
    %10 = vsyncpa [#allocation3], 0
    %11 = vsyncpa [#allocation6], 0
    %12 = vsyncpa [#allocation9], 0
    %13 = vsyncpa [#allocation4], 0
    // Predicated region
    $region2: #{tpu_custom_call.1} parent=1 // pred_check
      _
    $region3: #{tpu_custom_call.1} parent=1 // pred_check_branch
      %15 = sbr.rel (0) target = $region5
    $region4: #{tpu_custom_call.1} parent=1 // pred_region
      %s17 = ssub.s32 256, 256
      %18 = vsyncadd [#allocation3], %s17
      %s19 = sshll.u32 [#allocation2], 4
      %s20 = int_to_ptr.vmem [resolvable:$true] %s19
      %25 = dma.hbm_to_vmem [thread:$0]  %s0, 256, %s20, [#allocation3], 128, 128, 8
    $region5: #{tpu_custom_call.1} parent=1 // pred_fallthru
      _
    // Predicated region
    $region6: #{tpu_custom_call.1} parent=1 // pred_check
      _
    $region7: #{tpu_custom_call.1} parent=1 // pred_check_branch
      %27 = sbr.rel (0) target = $region9
    $region8: #{tpu_custom_call.1} parent=1 // pred_region
      %s29 = ssub.s32 256, 256
      %30 = vsyncadd [#allocation6], %s29
      %s31 = sshll.u32 [#allocation5], 4
      %s32 = int_to_ptr.vmem [resolvable:$true] %s31
      %37 = dma.hbm_to_vmem [thread:$0]  %s1, 256, %s32, [#allocation6], 128, 128, 8
    $region9: #{tpu_custom_call.1} parent=1 // pred_fallthru
      _
    // Predicated region
    $region10: #{tpu_custom_call.1} parent=1 // pred_check
      _
    $region11: #{tpu_custom_call.1} parent=1 // pred_check_branch
      %39 = sbr.rel (0) target = $region13
    $region12: #{tpu_custom_call.1} parent=1 // pred_region
      %s41 = ssub.s32 2048, 2048
      %42 = vsyncadd [#allocation6], %s41
      %s43 = sshll.u32 [#allocation7], 4
      %s44 = int_to_ptr.vmem [resolvable:$true] %s43
      %49 = dma.hbm_to_vmem [thread:$0]  %s2, 2048, %s44, [#allocation6], 128, 128, 8
    $region13: #{tpu_custom_call.1} parent=1 // pred_fallthru
      _
    // Predicated region
    $region14: #{tpu_custom_call.1} parent=1 // pred_check
      _
    $region15: #{tpu_custom_call.1} parent=1 // pred_check_branch
      %51 = sbr.rel (0) target = $region17
    $region16: #{tpu_custom_call.1} parent=1 // pred_region
      %s53 = ssub.s32 2048, 2048
      %54 = vsyncadd [#allocation9], %s53
      %s55 = sshll.u32 [#allocation8], 4
      %s56 = int_to_ptr.vmem [resolvable:$true] %s55
      %61 = dma.hbm_to_vmem [thread:$0]  %s3, 2048, %s56, [#allocation9], 128, 128, 8
    $region17: #{tpu_custom_call.1} parent=1 // pred_fallthru
      _
    // Predicated region
    $region18: #{tpu_custom_call.1} parent=1 // pred_check
      _
    $region19: #{tpu_custom_call.1} parent=1 // pred_check_branch
      %63 = sbr.rel (0) target = $region21
    $region20: #{tpu_custom_call.1} parent=1 // pred_region
      _
    $region21: #{tpu_custom_call.1} parent=1 // pred_fallthru
      _
    // Predicated region
    $region22: #{tpu_custom_call.1} parent=1 // pred_check
      _
    $region23: #{tpu_custom_call.1} parent=1 // pred_check_branch
      %65 = sbr.rel (0) target = $region25
    $region24: #{tpu_custom_call.1} parent=1 // pred_region
      %66 = dma.done [#allocation3], 256
    $region25: #{tpu_custom_call.1} parent=1 // pred_fallthru
      _
    // Predicated region
    $region26: #{tpu_custom_call.1} parent=1 // pred_check
      _
    $region27: #{tpu_custom_call.1} parent=1 // pred_check_branch
      %68 = sbr.rel (0) target = $region29
    $region28: #{tpu_custom_call.1} parent=1 // pred_region
      %69 = dma.done [#allocation6], 256
    $region29: #{tpu_custom_call.1} parent=1 // pred_fallthru
      _
    // Predicated region
    $region30: #{tpu_custom_call.1} parent=1 // pred_check
      _
    $region31: #{tpu_custom_call.1} parent=1 // pred_check_branch
      %71 = sbr.rel (0) target = $region33
    $region32: #{tpu_custom_call.1} parent=1 // pred_region
      %72 = dma.done [#allocation6], 2048
    $region33: #{tpu_custom_call.1} parent=1 // pred_fallthru
      _
    // Predicated region
    $region34: #{tpu_custom_call.1} parent=1 // pred_check
      _
    $region35: #{tpu_custom_call.1} parent=1 // pred_check_branch
      %74 = sbr.rel (0) target = $region37
    $region36: #{tpu_custom_call.1} parent=1 // pred_region
      %75 = dma.done [#allocation9], 2048
    $region37: #{tpu_custom_call.1} parent=1 // pred_fallthru
      _
    %v76 = vld [vmem:[#allocation2] sm:$0xff]
    %v77 = vld [vmem:[#allocation2 + $0x8] sm:$0xff]
    %v78 = vld [vmem:[#allocation5] sm:$0xff]
    %v79 = vld [vmem:[#allocation5 + $0x8] sm:$0xff]
    %v80 = vld [vmem:[#allocation7] sm:$0xff]
    %v81 = vld [vmem:[#allocation7 + $0x8] sm:$0xff]
    %v82 = vld [vmem:[#allocation7 + $0x10] sm:$0xff]
    %v83 = vld [vmem:[#allocation7 + $0x18] sm:$0xff]
    %v84 = vld [vmem:[#allocation7 + $0x20] sm:$0xff]
    %v85 = vld [vmem:[#allocation7 + $0x28] sm:$0xff]
    %v86 = vld [vmem:[#allocation7 + $0x30] sm:$0xff]
    %v87 = vld [vmem:[#allocation7 + $0x38] sm:$0xff]
    %v88 = vld [vmem:[#allocation7 + $0x40] sm:$0xff]
    %v89 = vld [vmem:[#allocation7 + $0x48] sm:$0xff]
    %v90 = vld [vmem:[#allocation7 + $0x50] sm:$0xff]
    %v91 = vld [vmem:[#allocation7 + $0x58] sm:$0xff]
    %v92 = vld [vmem:[#allocation7 + $0x60] sm:$0xff]
    %v93 = vld [vmem:[#allocation7 + $0x68] sm:$0xff]
    %v94 = vld [vmem:[#allocation7 + $0x70] sm:$0xff]
    %v95 = vld [vmem:[#allocation7 + $0x78] sm:$0xff]
    %v96 = vld [vmem:[#allocation8] sm:$0xff]
    %v97 = vld [vmem:[#allocation8 + $0x8] sm:$0xff]
    %v98 = vld [vmem:[#allocation8 + $0x10] sm:$0xff]
    %v99 = vld [vmem:[#allocation8 + $0x18] sm:$0xff]
    %v100 = vld [vmem:[#allocation8 + $0x20] sm:$0xff]
    %v101 = vld [vmem:[#allocation8 + $0x28] sm:$0xff]
    %v102 = vld [vmem:[#allocation8 + $0x30] sm:$0xff]
    %v103 = vld [vmem:[#allocation8 + $0x38] sm:$0xff]
    %v104 = vld [vmem:[#allocation8 + $0x40] sm:$0xff]
    %v105 = vld [vmem:[#allocation8 + $0x48] sm:$0xff]
    %v106 = vld [vmem:[#allocation8 + $0x50] sm:$0xff]
    %v107 = vld [vmem:[#allocation8 + $0x58] sm:$0xff]
    %v108 = vld [vmem:[#allocation8 + $0x60] sm:$0xff]
    %v109 = vld [vmem:[#allocation8 + $0x68] sm:$0xff]
    %v110 = vld [vmem:[#allocation8 + $0x70] sm:$0xff]
    %v111 = vld [vmem:[#allocation8 + $0x78] sm:$0xff]
    %112 = vmatprep.subr.mxu0 0.0
    %113 = vmatpush1.xpose.msra.mxu0 %v96
    %114 = vmatprep.subr.mxu0 0.0
    %115 = vmatpush1.xpose.msra.mxu0 %v97
    %116 = vmatprep.subr.mxu0 0.0
    %117 = vmatpush1.xpose.msra.mxu0 %v98
    %118 = vmatprep.subr.mxu0 0.0
    %119 = vmatpush1.xpose.msra.mxu0 %v99
    %120 = vmatprep.subr.mxu0 0.0
    %121 = vmatpush1.xpose.msra.mxu0 %v100
    %122 = vmatprep.subr.mxu0 0.0
    %123 = vmatpush1.xpose.msra.mxu0 %v101
    %124 = vmatprep.subr.mxu0 0.0
    %125 = vmatpush1.xpose.msra.mxu0 %v102
    %126 = vmatprep.subr.mxu0 0.0
    %127 = vmatpush1.xpose.msra.mxu0 %v103
    %128 = vmatprep.subr.mxu0 0.0
    %129 = vmatpush1.xpose.msra.mxu0 %v104
    %130 = vmatprep.subr.mxu0 0.0
    %131 = vmatpush1.xpose.msra.mxu0 %v105
    %132 = vmatprep.subr.mxu0 0.0
    %133 = vmatpush1.xpose.msra.mxu0 %v106
    %134 = vmatprep.subr.mxu0 0.0
    %135 = vmatpush1.xpose.msra.mxu0 %v107
    %136 = vmatprep.subr.mxu0 0.0
    %137 = vmatpush1.xpose.msra.mxu0 %v108
    %138 = vmatprep.subr.mxu0 0.0
    %139 = vmatpush1.xpose.msra.mxu0 %v109
    %140 = vmatprep.subr.mxu0 0.0
    %141 = vmatpush1.xpose.msra.mxu0 %v110
    %142 = vmatprep.subr.mxu0 0.0
    %143 = vmatpush1.xpose.msra.mxu0 %v111
    %144 = vmatprep.subr.mxu0 0.0
    %145 = vmatpush1.xpose.msra.mxu0 0.0
    %146 = vmatprep.subr.mxu0 0.0
    %147 = vmatpush1.xpose.msra.mxu0 0.0
    %148 = vmatprep.subr.mxu0 0.0
    %149 = vmatpush1.xpose.msra.mxu0 0.0
    %150 = vmatprep.subr.mxu0 0.0
    %151 = vmatpush1.xpose.msra.mxu0 0.0
    %152 = vmatprep.subr.mxu0 0.0
    %153 = vmatpush1.xpose.msra.mxu0 0.0
    %154 = vmatprep.subr.mxu0 0.0
    %155 = vmatpush1.xpose.msra.mxu0 0.0
    %156 = vmatprep.subr.mxu0 0.0
    %157 = vmatpush1.xpose.msra.mxu0 0.0
    %158 = vmatprep.subr.mxu0 0.0
    %159 = vmatpush1.xpose.msra.mxu0 0.0
    %160 = vmatprep.subr.mxu0 0.0
    %161 = vmatpush1.xpose.msra.mxu0 0.0
    %162 = vmatprep.subr.mxu0 0.0
    %163 = vmatpush1.xpose.msra.mxu0 0.0
    %164 = vmatprep.subr.mxu0 0.0
    %165 = vmatpush1.xpose.msra.mxu0 0.0
    %166 = vmatprep.subr.mxu0 0.0
    %167 = vmatpush1.xpose.msra.mxu0 0.0
    %168 = vmatprep.subr.mxu0 0.0
    %169 = vmatpush1.xpose.msra.mxu0 0.0
    %170 = vmatprep.subr.mxu0 0.0
    %171 = vmatpush1.xpose.msra.mxu0 0.0
    %172 = vmatprep.subr.mxu0 0.0
    %173 = vmatpush1.xpose.msra.mxu0 0.0
    %174 = vmatprep.subr.mxu0 0.0
    %175 = vmatpush1.xpose.msra.mxu0 0.0
    %176 = vmatprep.mubr.f32.mxu0 0.0
    %177 = vmatmul.mubr.f32.gmra.mrb[0].mxu0 %v78
    %v178 = vpop.f32.mrb[0].mxu0
    %v179 = vadd.f32 0.0, %v178
    %v180 = vpop.f32.mrb[0].mxu0
    %181 = vmatprep.mubr.f32.mxu0 0.0
    %182 = vmatmul.mubr.f32.gmra.mrb[0].mxu0 %v79
    %v183 = vpop.f32.mrb[0].mxu0
    %v184 = vadd.f32 0.0, %v183
    %v185 = vpop.f32.mrb[0].mxu0
    %186 = vdwg.mxu0
    %187 = vmatprep.subr.mxu0 0.0
    %188 = vmatpush1.xpose.msra.mxu0 %v80
    %189 = vmatprep.subr.mxu0 0.0
    %190 = vmatpush1.xpose.msra.mxu0 %v81
    %191 = vmatprep.subr.mxu0 0.0
    %192 = vmatpush1.xpose.msra.mxu0 %v82
    %193 = vmatprep.subr.mxu0 0.0
    %194 = vmatpush1.xpose.msra.mxu0 %v83
    %195 = vmatprep.subr.mxu0 0.0
    %196 = vmatpush1.xpose.msra.mxu0 %v84
    %197 = vmatprep.subr.mxu0 0.0
    %198 = vmatpush1.xpose.msra.mxu0 %v85
    %199 = vmatprep.subr.mxu0 0.0
    %200 = vmatpush1.xpose.msra.mxu0 %v86
    %201 = vmatprep.subr.mxu0 0.0
    %202 = vmatpush1.xpose.msra.mxu0 %v87
    %203 = vmatprep.subr.mxu0 0.0
    %204 = vmatpush1.xpose.msra.mxu0 %v88
    %205 = vmatprep.subr.mxu0 0.0
    %206 = vmatpush1.xpose.msra.mxu0 %v89
    %207 = vmatprep.subr.mxu0 0.0
    %208 = vmatpush1.xpose.msra.mxu0 %v90
    %209 = vmatprep.subr.mxu0 0.0
    %210 = vmatpush1.xpose.msra.mxu0 %v91
    %211 = vmatprep.subr.mxu0 0.0
    %212 = vmatpush1.xpose.msra.mxu0 %v92
    %213 = vmatprep.subr.mxu0 0.0
    %214 = vmatpush1.xpose.msra.mxu0 %v93
    %215 = vmatprep.subr.mxu0 0.0
    %216 = vmatpush1.xpose.msra.mxu0 %v94
    %217 = vmatprep.subr.mxu0 0.0
    %218 = vmatpush1.xpose.msra.mxu0 %v95
    %219 = vmatprep.subr.mxu0 0.0
    %220 = vmatpush1.xpose.msra.mxu0 0.0
    %221 = vmatprep.subr.mxu0 0.0
    %222 = vmatpush1.xpose.msra.mxu0 0.0
    %223 = vmatprep.subr.mxu0 0.0
    %224 = vmatpush1.xpose.msra.mxu0 0.0
    %225 = vmatprep.subr.mxu0 0.0
    %226 = vmatpush1.xpose.msra.mxu0 0.0
    %227 = vmatprep.subr.mxu0 0.0
    %228 = vmatpush1.xpose.msra.mxu0 0.0
    %229 = vmatprep.subr.mxu0 0.0
    %230 = vmatpush1.xpose.msra.mxu0 0.0
    %231 = vmatprep.subr.mxu0 0.0
    %232 = vmatpush1.xpose.msra.mxu0 0.0
    %233 = vmatprep.subr.mxu0 0.0
    %234 = vmatpush1.xpose.msra.mxu0 0.0
    %235 = vmatprep.subr.mxu0 0.0
    %236 = vmatpush1.xpose.msra.mxu0 0.0
    %237 = vmatprep.subr.mxu0 0.0
    %238 = vmatpush1.xpose.msra.mxu0 0.0
    %239 = vmatprep.subr.mxu0 0.0
    %240 = vmatpush1.xpose.msra.mxu0 0.0
    %241 = vmatprep.subr.mxu0 0.0
    %242 = vmatpush1.xpose.msra.mxu0 0.0
    %243 = vmatprep.subr.mxu0 0.0
    %244 = vmatpush1.xpose.msra.mxu0 0.0
    %245 = vmatprep.subr.mxu0 0.0
    %246 = vmatpush1.xpose.msra.mxu0 0.0
    %247 = vmatprep.subr.mxu0 0.0
    %248 = vmatpush1.xpose.msra.mxu0 0.0
    %249 = vmatprep.subr.mxu0 0.0
    %250 = vmatpush1.xpose.msra.mxu0 0.0
    %251 = vmatprep.mubr.f32.mxu0 0.0
    %252 = vmatmul.mubr.f32.gmra.mrb[0].mxu0 %v76
    %v253 = vpop.f32.mrb[0].mxu0
    %v254 = vadd.f32 %v179, %v253
    %v255 = vpop.f32.mrb[0].mxu0
    %256 = vmatprep.mubr.f32.mxu0 0.0
    %257 = vmatmul.mubr.f32.gmra.mrb[0].mxu0 %v77
    %v258 = vpop.f32.mrb[0].mxu0
    %v259 = vadd.f32 %v184, %v258
    %v260 = vpop.f32.mrb[0].mxu0
    %261 = vdwg.mxu0
    %v262 = vld [vmem:[%s4] sm:$0x1]
    %v264 = vlaneseq
    %v265 = vshrl.u32 %v264, 7
    %v266 = vsub.s32 0, %v265
    %v267 = vrot.slane %v262, %v266
    %v269 = vadd.f32 %v254, %v267
    %v270 = vadd.f32 %v259, %v267
    %v271 = vxor.u32 %v269, 2147483648
    %v272 = vxor.u32 %v270, 2147483648
    %v273 = vmul.f32 %v271, 1.442695
    %v274 = vpow.pop %v273
    %v275 = vmul.f32 %v272, 1.442695
    %v276 = vpow.pop %v275
    %v277 = vadd.f32 %v274, 1.0
    %v278 = vadd.f32 %v276, 1.0
    %v279 = vrcp.pop %v277
    %v280 = vmul.f32 1.0, %v279
    %v281 = vrcp.pop %v278
    %v282 = vmul.f32 1.0, %v281
    %v283 = vsub.f32 %v76, %v78
    %v284 = vsub.f32 %v77, %v79
    %v285 = vmul.f32 %v280, %v283
    %v286 = vmul.f32 %v282, %v284
    %v287 = vadd.f32 %v78, %v285
    %v288 = vadd.f32 %v79, %v286
    %289 = vst [vmem:[#allocation10] sm:$0xff] %v287
    %290 = vst [vmem:[#allocation10 + $0x8] sm:$0xff] %v288
    // Predicated region
    $region38: #{tpu_custom_call.1} parent=1 // pred_check
      _
    $region39: #{tpu_custom_call.1} parent=1 // pred_check_branch
      %292 = sbr.rel (0) target = $region41
    $region40: #{tpu_custom_call.1} parent=1 // pred_region
      %s294 = ssub.s32 256, 256
      %295 = vsyncadd [#allocation4], %s294
      %s296 = sshll.u32 [#allocation10], 4
      %s297 = int_to_ptr.vmem [resolvable:$true] %s296
      %302 = dma.vmem_to_hbm [thread:$0]  %s297, 256, %s5, [#allocation4], 128, 128, 8
    $region41: #{tpu_custom_call.1} parent=1 // pred_fallthru
      _
    // Predicated region
    $region42: #{tpu_custom_call.1} parent=1 // pred_check
      _
    $region43: #{tpu_custom_call.1} parent=1 // pred_check_branch
      %304 = sbr.rel (0) target = $region45
    $region44: #{tpu_custom_call.1} parent=1 // pred_region
      %305 = dma.done [#allocation4], 256
    $region45: #{tpu_custom_call.1} parent=1 // pred_fallthru
      _
    %306 = vsyncpa [#allocation3], 1
    %307 = vsyncpa [#allocation6], 1
    %308 = vsyncpa [#allocation9], 1
    %309 = vsyncpa [#allocation4], 1

</llo_original>
